<compile_context>
chip_gen: v5e
topology: v5e:2x2
jax: 0.10.0
libtpu: 0.0.40
codegen_flags: <defaults>
</compile_context>

<pallas_src>
import jax
import jax.numpy as jnp
from jax.experimental import pallas as pl
from jax.experimental.pallas import tpu as pltpu


_SOFTPLUS_THRESHOLD = 20.0  # matches torch.nn.functional.softplus defaults (beta=1)


def _mish_kernel(x_ref, o_ref):
    x = x_ref[...].astype(jnp.float32)
    # Numerically-stable softplus identical to PyTorch:
    #   softplus(x) = log1p(exp(x)) for x <= 20, else x (linear tail).
    sp = jnp.where(
        x > _SOFTPLUS_THRESHOLD,
        x,
        jnp.log1p(jnp.exp(jnp.minimum(x, _SOFTPLUS_THRESHOLD))),
    )
    o_ref[...] = (x * jnp.tanh(sp)).astype(o_ref.dtype)


def mish(x, *, lanes=1024, max_row_tile=256):
    """Mish(x) = x * tanh(softplus(x)) for an arbitrarily-shaped array."""
    orig_shape = x.shape
    orig_dtype = x.dtype
    flat = x.reshape(-1)
    size = flat.shape[0]

    # Lane-dense 2-D layout: (rows, lanes) with lanes a multiple of 128 and the
    # row tile a multiple of 8 (sublane), so block_shape satisfies (8, 128).
    rows = -(-size // lanes)
    row_tile = min(max_row_tile, ((rows + 7) // 8) * 8)
    rows_padded = -(-rows // row_tile) * row_tile
    padded_size = rows_padded * lanes

    if padded_size != size:
        flat = jnp.concatenate(
            [flat, jnp.zeros((padded_size - size,), orig_dtype)]
        )
    x2d = flat.reshape(rows_padded, lanes)

    out2d = pl.pallas_call(
        _mish_kernel,
        out_shape=jax.ShapeDtypeStruct((rows_padded, lanes), orig_dtype),
        grid=(rows_padded // row_tile,),
        in_specs=[pl.BlockSpec((row_tile, lanes), lambda i: (i, 0))],
        out_specs=pl.BlockSpec((row_tile, lanes), lambda i: (i, 0)),
        compiler_params=pltpu.CompilerParams(
            dimension_semantics=("parallel",),
        ),
    )(x2d)

    return out2d.reshape(-1)[:size].reshape(orig_shape)


def _mish_reference(x):
    # Pure-JAX reference for correctness checking.
    return x * jnp.tanh(jax.nn.softplus(x))


if __name__ == "__main__":
    N, C, H, W = 2, 4, 16, 16
    key = jax.random.PRNGKey(0)
    x = jax.random.normal(key, (N, C, H, W), jnp.float32) * 5.0  # NCHW input

    out = mish(x)
    jax.block_until_ready(out)

    assert out.shape == x.shape, out.shape
    ref = _mish_reference(x)
    assert jnp.allclose(out, ref, atol=1e-5, rtol=1e-5), (
        float(jnp.max(jnp.abs(out - ref)))
    )
    print("KERNEL_OK")
</pallas_src>

<mosaic_0001>
module attributes {stable_mosaic.version = 11 : i64} {
  func.func @_mish_kernel(%arg0: i32, %arg1: memref<8x1024xf32, #tpu.memory_space<vmem>>, %arg2: memref<8x1024xf32, #tpu.memory_space<vmem>>) attributes {dimension_semantics = [#tpu.dimension_semantics<parallel>], iteration_bounds = array<i64: 1>, scalar_prefetch = 0 : i64, scratch_operands = 0 : i64, tpu.core_type = #tpu.core_type<tc>, window_params = [{transform_indices = @transform_0, window_bounds = array<i64: 8, 1024>}, {transform_indices = @transform_1, window_bounds = array<i64: 8, 1024>}]} {
    %c0 = arith.constant 0 : index
    %c0_0 = arith.constant 0 : index
    %0 = vector.load %arg1[%c0, %c0_0] : memref<8x1024xf32, #tpu.memory_space<vmem>>, vector<8x1024xf32>
    %cst = arith.constant 2.000000e+01 : f32
    %1 = vector.broadcast %cst : f32 to vector<8x1024xf32>
    %2 = arith.cmpf ogt, %0, %1 : vector<8x1024xf32>
    %cst_1 = arith.constant 2.000000e+01 : f32
    %3 = vector.broadcast %cst_1 : f32 to vector<8x1024xf32>
    %4 = arith.minimumf %0, %3 : vector<8x1024xf32>
    %5 = math.exp %4 : vector<8x1024xf32>
    %6 = math.log1p %5 : vector<8x1024xf32>
    %7 = arith.select %2, %0, %6 : vector<8x1024xi1>, vector<8x1024xf32>
    %8 = math.tanh %7 : vector<8x1024xf32>
    %9 = arith.mulf %0, %8 : vector<8x1024xf32>
    %c0_2 = arith.constant 0 : index
    %c0_3 = arith.constant 0 : index
    %10 = vector.load %arg2[%c0_2, %c0_3] : memref<8x1024xf32, #tpu.memory_space<vmem>>, vector<8x1024xf32>
    tpu.vector_store %arg2[%c0_2, %c0_3], %9 {strides = array<i32>} : memref<8x1024xf32, #tpu.memory_space<vmem>>, vector<8x1024xf32>,
    return
  }
  func.func @transform_0(%arg0: i32) -> (i32, i32) {
    %c0_i32 = arith.constant 0 : i32
    %c0_i32_0 = arith.constant 0 : i32
    return %arg0, %c0_i32 : i32, i32
  }
  func.func @transform_1(%arg0: i32) -> (i32, i32) {
    %c0_i32 = arith.constant 0 : i32
    %c0_i32_0 = arith.constant 0 : i32
    return %arg0, %c0_i32 : i32, i32
  }
}

</mosaic_0001>

<llo_original>
// kernel: tpu_custom_call.1
$region0: #{tpu_custom_call.1}
  #allocation0 [shape = 'u32[]', space=smem, size = 0x4, offset = 0x4, fixed_abs, tag = 'smem constant byte address 0x4 - core index']
  #allocation1 [shape = 'u32[72,128]{1,0:T(1,128)}', space=vmem, size = 0x9000, scoped, tag = 'internal scratch']
  %s0 = inlined_call_operand.hbm [shape: f32[8,1024], index: 0, kind: input, shape index: {}]
  %s1 = inlined_call_operand.hbm [shape: f32[8,1024], index: 1, kind: output, shape index: {}]
  %s2 = sld [smem:[#allocation0]]
  $region18: #{tpu_custom_call.1} parent=0
    _
  %s4 = ssub.s32 1, %s2
  %s5 = scalar_select 0, %s4, %s2
  $region1: #{tpu_custom_call.1} parent=0
    #allocation2 [shape = 'u8[32768]{0}', space=vmem, size = 0x8000, scoped, tag = 'input window, operand 0, single buffered']
    #allocation3 [shape = 's32[1]{0}', space=sflag, size = 0x4, scoped, tag = 'scoped memory for tpu_custom_call.1']
    #allocation4 [shape = 's32[1]{0}', space=sflag, size = 0x4, scoped, tag = 'scoped memory for tpu_custom_call.1']
    #allocation5 [shape = 'u8[32768]{0}', space=vmem, size = 0x8000, scoped, tag = 'output window, operand 0, single buffered']
    %6 = vsyncpa [#allocation3], 0
    %7 = vsyncpa [#allocation4], 0
    // Predicated region
    $region2: #{tpu_custom_call.1} parent=1 // pred_check
      _
    $region3: #{tpu_custom_call.1} parent=1 // pred_check_branch
      %9 = sbr.rel (0) target = $region5
    $region4: #{tpu_custom_call.1} parent=1 // pred_region
      %11 = vsyncadd [#allocation3], 0
      %s13 = sshll.u32 %s0, 4
      %s14 = int_to_ptr.hbm [resolvable:$true] %s13
      %s15 = sshll.u32 [#allocation2], 4
      %s16 = int_to_ptr.vmem [resolvable:$true] %s15
      %18 = dma.hbm_to_vmem [thread:$0]  %s14, 1024, %s16, [#allocation3]
    $region5: #{tpu_custom_call.1} parent=1 // pred_fallthru
      _
    // Predicated region
    $region6: #{tpu_custom_call.1} parent=1 // pred_check
      _
    $region7: #{tpu_custom_call.1} parent=1 // pred_check_branch
      %20 = sbr.rel (0) target = $region9
    $region8: #{tpu_custom_call.1} parent=1 // pred_region
      %22 = dma.done [#allocation3], 1024
    $region9: #{tpu_custom_call.1} parent=1 // pred_fallthru
      _
    %v23 = vld [vmem:[#allocation2] sm:$0xff]
    %v24 = vld [vmem:[#allocation2 + $0x8] sm:$0xff]
    %v25 = vld [vmem:[#allocation2 + $0x10] sm:$0xff]
    %v26 = vld [vmem:[#allocation2 + $0x18] sm:$0xff]
    %v27 = vld [vmem:[#allocation2 + $0x20] sm:$0xff]
    %v28 = vld [vmem:[#allocation2 + $0x28] sm:$0xff]
    %v29 = vld [vmem:[#allocation2 + $0x30] sm:$0xff]
    %v30 = vld [vmem:[#allocation2 + $0x38] sm:$0xff]
    %vm31 = vcmp.gt.f32.partialorder %v23, 20.0
    %vm32 = vcmp.gt.f32.partialorder %v24, 20.0
    %vm33 = vcmp.gt.f32.partialorder %v25, 20.0
    %vm34 = vcmp.gt.f32.partialorder %v26, 20.0
    %vm35 = vcmp.gt.f32.partialorder %v27, 20.0
    %vm36 = vcmp.gt.f32.partialorder %v28, 20.0
    %vm37 = vcmp.gt.f32.partialorder %v29, 20.0
    %vm38 = vcmp.gt.f32.partialorder %v30, 20.0
    %v39 = vmin.f32 %v23, 20.0
    %v40 = vmin.f32 %v24, 20.0
    %v41 = vmin.f32 %v25, 20.0
    %v42 = vmin.f32 %v26, 20.0
    %v43 = vmin.f32 %v27, 20.0
    %v44 = vmin.f32 %v28, 20.0
    %v45 = vmin.f32 %v29, 20.0
    %v46 = vmin.f32 %v30, 20.0
    %v47 = vmul.f32 %v39, 1.442695
    %v48 = vpow.pop %v47
    %v49 = vmul.f32 %v40, 1.442695
    %v50 = vpow.pop %v49
    %v51 = vmul.f32 %v41, 1.442695
    %v52 = vpow.pop %v51
    %v53 = vmul.f32 %v42, 1.442695
    %v54 = vpow.pop %v53
    %v55 = vmul.f32 %v43, 1.442695
    %v56 = vpow.pop %v55
    %v57 = vmul.f32 %v44, 1.442695
    %v58 = vpow.pop %v57
    %v59 = vmul.f32 %v45, 1.442695
    %v60 = vpow.pop %v59
    %v61 = vmul.f32 %v46, 1.442695
    %v62 = vpow.pop %v61
    %v63 = vadd.f32 %v48, 1.0
    %v64 = vlog2.pop %v63
    %v65 = vmul.f32 %v64, 0.6931472
    %v66 = vmul.f32 -0.5, %v48
    %v67 = vadd.f32 %v66, 1.0
    %v68 = vmul.f32 %v67, %v48
    %v69 = vand.u32 2147483647, %v48
    %vm70 = vcmp.lt.f32.partialorder %v69, 0.0004427343
    %v71 = vsel %vm70, %v68, %v65
    %v72 = vadd.f32 %v50, 1.0
    %v73 = vlog2.pop %v72
    %v74 = vmul.f32 %v73, 0.6931472
    %v75 = vmul.f32 -0.5, %v50
    %v76 = vadd.f32 %v75, 1.0
    %v77 = vmul.f32 %v76, %v50
    %v78 = vand.u32 2147483647, %v50
    %vm79 = vcmp.lt.f32.partialorder %v78, 0.0004427343
    %v80 = vsel %vm79, %v77, %v74
    %v81 = vadd.f32 %v52, 1.0
    %v82 = vlog2.pop %v81
    %v83 = vmul.f32 %v82, 0.6931472
    %v84 = vmul.f32 -0.5, %v52
    %v85 = vadd.f32 %v84, 1.0
    %v86 = vmul.f32 %v85, %v52
    %v87 = vand.u32 2147483647, %v52
    %vm88 = vcmp.lt.f32.partialorder %v87, 0.0004427343
    %v89 = vsel %vm88, %v86, %v83
    %v90 = vadd.f32 %v54, 1.0
    %v91 = vlog2.pop %v90
    %v92 = vmul.f32 %v91, 0.6931472
    %v93 = vmul.f32 -0.5, %v54
    %v94 = vadd.f32 %v93, 1.0
    %v95 = vmul.f32 %v94, %v54
    %v96 = vand.u32 2147483647, %v54
    %vm97 = vcmp.lt.f32.partialorder %v96, 0.0004427343
    %v98 = vsel %vm97, %v95, %v92
    %v99 = vadd.f32 %v56, 1.0
    %v100 = vlog2.pop %v99
    %v101 = vmul.f32 %v100, 0.6931472
    %v102 = vmul.f32 -0.5, %v56
    %v103 = vadd.f32 %v102, 1.0
    %v104 = vmul.f32 %v103, %v56
    %v105 = vand.u32 2147483647, %v56
    %vm106 = vcmp.lt.f32.partialorder %v105, 0.0004427343
    %v107 = vsel %vm106, %v104, %v101
    %v108 = vadd.f32 %v58, 1.0
    %v109 = vlog2.pop %v108
    %v110 = vmul.f32 %v109, 0.6931472
    %v111 = vmul.f32 -0.5, %v58
    %v112 = vadd.f32 %v111, 1.0
    %v113 = vmul.f32 %v112, %v58
    %v114 = vand.u32 2147483647, %v58
    %vm115 = vcmp.lt.f32.partialorder %v114, 0.0004427343
    %v116 = vsel %vm115, %v113, %v110
    %v117 = vadd.f32 %v60, 1.0
    %v118 = vlog2.pop %v117
    %v119 = vmul.f32 %v118, 0.6931472
    %v120 = vmul.f32 -0.5, %v60
    %v121 = vadd.f32 %v120, 1.0
    %v122 = vmul.f32 %v121, %v60
    %v123 = vand.u32 2147483647, %v60
    %vm124 = vcmp.lt.f32.partialorder %v123, 0.0004427343
    %v125 = vsel %vm124, %v122, %v119
    %v126 = vadd.f32 %v62, 1.0
    %v127 = vlog2.pop %v126
    %v128 = vmul.f32 %v127, 0.6931472
    %v129 = vmul.f32 -0.5, %v62
    %v130 = vadd.f32 %v129, 1.0
    %v131 = vmul.f32 %v130, %v62
    %v132 = vand.u32 2147483647, %v62
    %vm133 = vcmp.lt.f32.partialorder %v132, 0.0004427343
    %v134 = vsel %vm133, %v131, %v128
    %v135 = vsel %vm31, %v23, %v71
    %v136 = vsel %vm32, %v24, %v80
    %v137 = vsel %vm33, %v25, %v89
    %v138 = vsel %vm34, %v26, %v98
    %v139 = vsel %vm35, %v27, %v107
    %v140 = vsel %vm36, %v28, %v116
    %v141 = vsel %vm37, %v29, %v125
    %v142 = vsel %vm38, %v30, %v134
    %v143 = vtanh.pop %v135
    %v144 = vtanh.pop %v136
    %v145 = vtanh.pop %v137
    %v146 = vtanh.pop %v138
    %v147 = vtanh.pop %v139
    %v148 = vtanh.pop %v140
    %v149 = vtanh.pop %v141
    %v150 = vtanh.pop %v142
    %v151 = vmul.f32 %v23, %v143
    %v152 = vmul.f32 %v24, %v144
    %v153 = vmul.f32 %v25, %v145
    %v154 = vmul.f32 %v26, %v146
    %v155 = vmul.f32 %v27, %v147
    %v156 = vmul.f32 %v28, %v148
    %v157 = vmul.f32 %v29, %v149
    %v158 = vmul.f32 %v30, %v150
    %159 = vst [vmem:[#allocation5] sm:$0xff] %v151
    %160 = vst [vmem:[#allocation5 + $0x8] sm:$0xff] %v152
    %161 = vst [vmem:[#allocation5 + $0x10] sm:$0xff] %v153
    %162 = vst [vmem:[#allocation5 + $0x18] sm:$0xff] %v154
    %163 = vst [vmem:[#allocation5 + $0x20] sm:$0xff] %v155
    %164 = vst [vmem:[#allocation5 + $0x28] sm:$0xff] %v156
    %165 = vst [vmem:[#allocation5 + $0x30] sm:$0xff] %v157
    %166 = vst [vmem:[#allocation5 + $0x38] sm:$0xff] %v158
    // Predicated region
    $region10: #{tpu_custom_call.1} parent=1 // pred_check
      _
    $region11: #{tpu_custom_call.1} parent=1 // pred_check_branch
      %168 = sbr.rel (0) target = $region13
    $region12: #{tpu_custom_call.1} parent=1 // pred_region
      %170 = vsyncadd [#allocation4], 0
      %s172 = sshll.u32 [#allocation5], 4
      %s173 = int_to_ptr.vmem [resolvable:$true] %s172
      %s174 = sshll.u32 %s1, 4
      %s175 = int_to_ptr.hbm [resolvable:$true] %s174
      %177 = dma.vmem_to_hbm [thread:$0]  %s173, 1024, %s175, [#allocation4]
    $region13: #{tpu_custom_call.1} parent=1 // pred_fallthru
      _
    // Predicated region
    $region14: #{tpu_custom_call.1} parent=1 // pred_check
      _
    $region15: #{tpu_custom_call.1} parent=1 // pred_check_branch
      %179 = sbr.rel (0) target = $region17
    $region16: #{tpu_custom_call.1} parent=1 // pred_region
      %181 = dma.done [#allocation4], 1024
    $region17: #{tpu_custom_call.1} parent=1 // pred_fallthru
      _
    %182 = vsyncpa [#allocation3], 1
    %183 = vsyncpa [#allocation4], 1

</llo_original>
